<compile_context>
chip_gen: v7x
topology: tpu7x:2x2x1
jax: 0.10.0
libtpu: 0.0.40
codegen_flags: <defaults>
</compile_context>

<pallas_src>
import functools

import jax
import jax.numpy as jnp
from jax import lax
from jax.experimental import pallas as pl
from jax.experimental.pallas import tpu as pltpu


def _atrous_bn_relu_kernel(xs_ref, w_ref, bias_ref, out_ref):
    """One (image, spatial-lane-tile) per grid step.

    xs_ref  : (K*K*Cin, P_tile) bf16   -- wrapper-built im2col patches
    w_ref   : (Cout, K*K*Cin)   bf16   -- BN scale folded in
    bias_ref: (Cout, 1)         f32    -- folded BN bias
    out_ref : (Cout, P_tile)    out dtype (NCHW, flattened spatial)
    """
    acc = jnp.dot(w_ref[...], xs_ref[...],
                  preferred_element_type=jnp.float32)      # (Cout, P_tile) f32
    out_ref[...] = jnp.maximum(acc + bias_ref[...], 0.0).astype(out_ref.dtype)


def atrous_convolution_forward(x_nchw, weight_oihw, gamma, beta,
                               running_mean, running_var,
                               *, pad, dilation, eps=1e-5,
                               out_dtype=jnp.float32,
                               lane_tile_max=2048):
    """Equivalent of Atrous_Convolution.forward (BN in eval/running-stats mode).

    Returns NCHW output (dtype = out_dtype; bf16 recommended on v5e).
    """
    N, Cin, H, W = x_nchw.shape
    Cout, _, K, _ = weight_oihw.shape
    H_out = H + 2 * pad - dilation * (K - 1)
    W_out = W + 2 * pad - dilation * (K - 1)
    P = H_out * W_out
    KKC = K * K * Cin

    # ---- BN folding: scale into the weights, keep only +bias in-kernel ----
    scale = gamma / jnp.sqrt(running_var + eps)                       # (Cout,)
    bias = (beta - running_mean * scale).reshape(Cout, 1).astype(jnp.float32)
    w_folded = weight_oihw * scale[:, None, None, None]               # (Cout,Cin,K,K)
    # contraction ordering (kh, kw, ci), bf16 for the MXU
    w_mat = jnp.transpose(w_folded, (0, 2, 3, 1)).reshape(Cout, KKC)
    w_mat = w_mat.astype(jnp.bfloat16)

    # ---- wrapper-side im2col (bf16 staging), ordering (kh, kw, ci) ----
    x_bf = x_nchw.astype(jnp.bfloat16)
    xpad = jnp.pad(x_bf, ((0, 0), (0, 0), (pad, pad), (pad, pad)))
    taps = []
    for kh in range(K):
        for kw in range(K):
            taps.append(xpad[:, :,
                             kh * dilation:kh * dilation + H_out,
                             kw * dilation:kw * dilation + W_out])    # (N,Cin,H_out,W_out)
    xs = jnp.stack(taps, axis=1)                                      # (N,K*K,Cin,H_out,W_out)
    xs = xs.reshape(N, KKC, P)                                        # (N, K*K*Cin, P)

    # ---- lane-dense spatial tiling: pad P to a multiple of 128 (and of the
    #      chosen lane tile), cap the tile so real shapes fit v7x VMEM ----
    P_pad128 = pl.cdiv(P, 128) * 128
    P_tile = min(P_pad128, lane_tile_max)
    n_tiles = pl.cdiv(P_pad128, P_tile)
    P_full = n_tiles * P_tile
    if P_full != P:
        xs = jnp.pad(xs, ((0, 0), (0, 0), (0, P_full - P)))

    out_itemsize = jnp.dtype(out_dtype).itemsize
    cost = pl.CostEstimate(
        flops=2 * N * Cout * KKC * P_full,
        transcendentals=0,
        bytes_accessed=(N * KKC * P_full * 2          # xs (bf16)
                        + Cout * KKC * 2              # weights (bf16)
                        + Cout * 4                    # bias (f32)
                        + N * Cout * P_full * out_itemsize))

    # VMEM budget per step (double-buffered xs + out tiles, resident weights).
    tile_bytes = (2 * KKC * P_tile * 2
                  + 2 * Cout * P_tile * out_itemsize
                  + Cout * KKC * 2 + Cout * 4)
    vmem_limit = int(min(64 * 1024 * 1024, max(16 * 1024 * 1024, 4 * tile_bytes)))

    out = pl.pallas_call(
        _atrous_bn_relu_kernel,
        out_shape=jax.ShapeDtypeStruct((N, Cout, P_full), out_dtype),
        grid=(N, n_tiles),
        in_specs=[
            pl.BlockSpec((pl.Squeezed(), KKC, P_tile), lambda n, t: (n, 0, t)),
            pl.BlockSpec((Cout, KKC), lambda n, t: (0, 0)),
            pl.BlockSpec((Cout, 1), lambda n, t: (0, 0)),
        ],
        out_specs=pl.BlockSpec((pl.Squeezed(), Cout, P_tile),
                               lambda n, t: (n, 0, t)),
        compiler_params=pltpu.CompilerParams(
            dimension_semantics=("parallel", "parallel"),
            vmem_limit_bytes=vmem_limit),
        cost_estimate=cost,
    )(xs, w_mat, bias)

    out = out[:, :, :P]                                              # crop lane padding
    return out.reshape(N, Cout, H_out, W_out)                        # NCHW


def _reference(x_nchw, weight_oihw, gamma, beta, mean, var, *, pad, dilation, eps=1e-5):
    # Matches the kernel's numerics: BN scale folded into the weights, weights
    # and activations rounded to bf16, conv accumulated in f32, then +bias/ReLU.
    scale = gamma / jnp.sqrt(var + eps)
    w_folded = (weight_oihw * scale[:, None, None, None]).astype(jnp.bfloat16).astype(jnp.float32)
    x_bf = x_nchw.astype(jnp.bfloat16).astype(jnp.float32)
    y = lax.conv_general_dilated(
        x_bf, w_folded,
        window_strides=(1, 1),
        padding=((pad, pad), (pad, pad)),
        rhs_dilation=(dilation, dilation),
        dimension_numbers=("NCHW", "OIHW", "NCHW"))
    bias = (beta - mean * scale).reshape(1, -1, 1, 1)
    return jnp.maximum(y + bias, 0.0)


if __name__ == "__main__":
    key = jax.random.PRNGKey(0)
    k1, k2, k3, k4, k5, k6 = jax.random.split(key, 6)

    # Small shapes consistent with the module:
    N, Cin, H, W = 2, 4, 16, 16
    Cout, K = 16, 3
    dilation = 2
    pad = 2  # "same" padding for K=3, dilation=2 -> output spatial == input spatial

    x = jax.random.normal(k1, (N, Cin, H, W), dtype=jnp.float32)
    weight = 0.1 * jax.random.normal(k2, (Cout, Cin, K, K), dtype=jnp.float32)
    gamma = 1.0 + 0.1 * jax.random.normal(k3, (Cout,), dtype=jnp.float32)
    beta = 0.1 * jax.random.normal(k4, (Cout,), dtype=jnp.float32)
    running_mean = 0.1 * jax.random.normal(k5, (Cout,), dtype=jnp.float32)
    running_var = jnp.abs(1.0 + 0.1 * jax.random.normal(k6, (Cout,), dtype=jnp.float32))

    out = atrous_convolution_forward(
        x, weight, gamma, beta, running_mean, running_var,
        pad=pad, dilation=dilation, out_dtype=jnp.float32)
    out = jax.block_until_ready(out)

    ref = _reference(x, weight, gamma, beta, running_mean, running_var,
                     pad=pad, dilation=dilation)
    assert out.shape == ref.shape == (N, Cout, H, W)
    max_err = jnp.max(jnp.abs(out - ref))
    assert jnp.allclose(out, ref, atol=2e-3, rtol=2e-3), (
        f"mismatch vs reference, max|diff|={max_err}")

    print("KERNEL_OK")
</pallas_src>

<mosaic_0001>
module attributes {stable_mosaic.version = 11 : i64} {
  func.func @_atrous_bn_relu_kernel(%arg0: i32, %arg1: i32, %arg2: memref<1x36x256xbf16, #tpu.memory_space<vmem>>, %arg3: memref<16x36xbf16, #tpu.memory_space<vmem>>, %arg4: memref<16x1xf32, #tpu.memory_space<vmem>>, %arg5: memref<1x16x256xf32, #tpu.memory_space<vmem>>) attributes {dimension_semantics = [#tpu.dimension_semantics<parallel>, #tpu.dimension_semantics<parallel>], iteration_bounds = array<i64: 2, 1>, scalar_prefetch = 0 : i64, scratch_operands = 0 : i64, tpu.core_type = #tpu.core_type<tc>, window_params = [{transform_indices = @transform_0, window_bounds = array<i64: 1, 36, 256>}, {pipeline_mode = #tpu.pipeline_mode<synchronous>, transform_indices = @transform_1, window_bounds = array<i64: 16, 36>}, {pipeline_mode = #tpu.pipeline_mode<synchronous>, transform_indices = @transform_2, window_bounds = array<i64: 16, 1>}, {transform_indices = @transform_3, window_bounds = array<i64: 1, 16, 256>}]} {
    %c0 = arith.constant 0 : index
    %c0_0 = arith.constant 0 : index
    %0 = vector.load %arg3[%c0, %c0_0] : memref<16x36xbf16, #tpu.memory_space<vmem>>, vector<16x36xbf16>
    %c0_1 = arith.constant 0 : index
    %c0_2 = arith.constant 0 : index
    %c0_3 = arith.constant 0 : index
    %1 = vector.load %arg2[%c0_1, %c0_2, %c0_3] : memref<1x36x256xbf16, #tpu.memory_space<vmem>>, vector<1x36x256xbf16>
    %2 = vector.shape_cast %1 : vector<1x36x256xbf16> to vector<36x256xbf16>
    %cst = arith.constant dense<0.000000e+00> : vector<16x256xf32>
    %3 = tpu.matmul %0, %2, %cst {dimension_numbers = #tpu.dot_dimension_numbers<[1], [0], [0], [1], [0, 0, 1, 1], [], []>} : vector<16x36xbf16>, vector<36x256xbf16>, vector<16x256xf32> -> vector<16x256xf32>
    %c0_4 = arith.constant 0 : index
    %c0_5 = arith.constant 0 : index
    %4 = vector.load %arg4[%c0_4, %c0_5] : memref<16x1xf32, #tpu.memory_space<vmem>>, vector<16x1xf32>
    %5 = vector.broadcast %4 : vector<16x1xf32> to vector<16x256xf32>
    %6 = arith.addf %3, %5 : vector<16x256xf32>
    %cst_6 = arith.constant 0.000000e+00 : f32
    %7 = vector.broadcast %cst_6 : f32 to vector<16x256xf32>
    %8 = arith.maximumf %6, %7 : vector<16x256xf32>
    %c0_7 = arith.constant 0 : index
    %c0_8 = arith.constant 0 : index
    %c0_9 = arith.constant 0 : index
    %9 = vector.load %arg5[%c0_7, %c0_8, %c0_9] : memref<1x16x256xf32, #tpu.memory_space<vmem>>, vector<1x16x256xf32>
    %10 = vector.shape_cast %9 : vector<1x16x256xf32> to vector<16x256xf32>
    %11 = vector.shape_cast %8 : vector<16x256xf32> to vector<1x16x256xf32>
    tpu.vector_store %arg5[%c0_7, %c0_8, %c0_9], %11 {strides = array<i32>} : memref<1x16x256xf32, #tpu.memory_space<vmem>>, vector<1x16x256xf32>,
    return
  }
  func.func @transform_0(%arg0: i32, %arg1: i32) -> (i32, i32, i32) {
    %c0_i32 = arith.constant 0 : i32
    %c0_i32_0 = arith.constant 0 : i32
    return %arg0, %c0_i32, %arg1 : i32, i32, i32
  }
  func.func @transform_1(%arg0: i32, %arg1: i32) -> (i32, i32) {
    %c0_i32 = arith.constant 0 : i32
    %c0_i32_0 = arith.constant 0 : i32
    %c0_i32_1 = arith.constant 0 : i32
    return %c0_i32, %c0_i32_0 : i32, i32
  }
  func.func @transform_2(%arg0: i32, %arg1: i32) -> (i32, i32) {
    %c0_i32 = arith.constant 0 : i32
    %c0_i32_0 = arith.constant 0 : i32
    %c0_i32_1 = arith.constant 0 : i32
    return %c0_i32, %c0_i32_0 : i32, i32
  }
  func.func @transform_3(%arg0: i32, %arg1: i32) -> (i32, i32, i32) {
    %c0_i32 = arith.constant 0 : i32
    %c0_i32_0 = arith.constant 0 : i32
    return %arg0, %c0_i32, %arg1 : i32, i32, i32
  }
}

</mosaic_0001>

<llo_original>
// kernel: tpu_custom_call.1
$region0: #{tpu_custom_call.1}
  #allocation0 [shape = 'u32[]', space=smem, size = 0x4, offset = 0x4, fixed_abs, tag = 'smem constant byte address 0x4 - core index']
  #allocation1 [shape = 'u32[144,128]{1,0:T(1,128)}', space=vmem, size = 0x12000, scoped, tag = 'internal scratch']
  %s0 = inlined_call_operand.vmem [shape: bf16[2,36,256], index: 0, kind: input, shape index: {}]
  %s1 = inlined_call_operand.vmem [shape: bf16[16,36], index: 1, kind: input, shape index: {}]
  %s2 = inlined_call_operand.vmem [shape: f32[16,1], index: 2, kind: input, shape index: {}]
  %s3 = inlined_call_operand.hbm [shape: f32[2,16,256], index: 3, kind: output, shape index: {}]
  %s4 = sld [smem:[#allocation0]]
  $region45: #{tpu_custom_call.1} parent=0
    _
  %s6 = ssub.s32 1, %s4
  %s7 = scalar_select 0, %s6, %s4
  $region1: #{tpu_custom_call.1} parent=0
    #allocation2 [shape = 'u8[32768]{0}', space=vmem, size = 0x8000, scoped, tag = 'output window, operand 0']
    #allocation3 [shape = 's32[2]{0}', space=sflag, size = 0x8, scoped, tag = 'scoped memory for tpu_custom_call.1']
    %8 = vsyncpa [#allocation3], 0
    %s9 = scalar_lea.sflag [#allocation3], 1
    %10 = vsyncpa %s9, 0
    loop: start=0, step=1, limit=4
    $region2: #{tpu_custom_call.1} parent=1 // loop_pre_header
      _
    $region3: #{tpu_custom_call.1} parent=1 // loop_header
      %s12 = sphi 0, %s16
      %p13 = scmp.ge.s32.totalorder %s12, 4
      %s19 = sphi 0, %s31
      %s20 = sphi 0, %s27
      %s21 = sphi 0, %s19
      %s22 = sphi 0, %s20
      %s23 = sphi 0, %s21
      %s24 = sphi 0, %s22
      %s36 = sphi 0, %s38
      %s39 = sphi 0, %s36
      %s40 = sphi 0, %s39
      %s56 = sphi 0, %s40
      %s60 = sphi 0, %s60
      %s62 = sphi 0, %s60
      %s63 = sphi 0, %s62
      %s77 = sphi 0, %s63
      %s81 = sphi 0, %s81
      %s83 = sphi 0, %s81
      %s84 = sphi 0, %s83
      %s98 = sphi 0, %s84
      %s106 = sphi 0, %s108
      %s109 = sphi 0, %s106
      %s110 = sphi 0, %s109
      %s126 = sphi 0, %s110
    $region4: #{tpu_custom_call.1} parent=1 // loop_header_branch
      %15 = sbr.rel (%p13) target = $region8
    $region5: #{tpu_custom_call.1} parent=1 // loop_body
      %s17 = ssub.s32 %s12, 1
      %s18 = ssub.s32 %s12, 2
      %s25 = sadd.s32 1, %s20
      %p26 = scmp.ge.s32.totalorder %s25, 1
      %s27 = scalar_select %p26, 0, %s25
      %s28 = sadd.s32 1, %s19
      %s29 = scalar_select %p26, %s28, %s19
      %p30 = scmp.ge.s32.totalorder %s29, 2
      %s31 = scalar_select %p30, 0, %s29
      %s32 = ssub.s32 %s19, %s31
      %s33 = ssub.s32 %s20, %s27
      %s34 = sor.u32 %s32, %s33
      %p35 = scmp.eq.s32.totalorder %s34, 0
      %s37 = sadd.s32 %s36, 1
      %s38 = scalar_select %p35, %s36, %s37
      %p41 = pneg %p35
      %p42 = scmp.eq.s32.totalorder %s12, 1
      %p43 = por %p41, %p42
      %p44 = scmp.ne.s32.totalorder %s36, %s39
      %p45 = scmp.eq.s32.totalorder %s12, 0
      %p46 = por %p44, %p45
      %p47 = scmp.ne.s32.totalorder %s36, %s39
      %p48 = scmp.eq.s32.totalorder %s17, 1
      %p49 = por %p47, %p48
      %p50 = scmp.ne.s32.totalorder %s39, %s40
      %p51 = scmp.eq.s32.totalorder %s17, 0
      %p52 = por %p50, %p51
      %p53 = scmp.ne.s32.totalorder %s39, %s40
      %p54 = scmp.eq.s32.totalorder %s18, 1
      %p55 = por %p53, %p54
      %p57 = scmp.ne.s32.totalorder %s40, %s56
      %p58 = scmp.eq.s32.totalorder %s18, 0
      %p59 = por %p57, %p58
      %s61 = sadd.s32 %s60, 1
      %p64 = scmp.eq.s32.totalorder %s12, 1
      %p65 = scmp.ne.s32.totalorder %s60, %s62
      %p66 = scmp.eq.s32.totalorder %s12, 0
      %p67 = por %p65, %p66
      %p68 = scmp.ne.s32.totalorder %s60, %s62
      %p69 = scmp.eq.s32.totalorder %s17, 1
      %p70 = por %p68, %p69
      %p71 = scmp.ne.s32.totalorder %s62, %s63
      %p72 = scmp.eq.s32.totalorder %s17, 0
      %p73 = por %p71, %p72
      %p74 = scmp.ne.s32.totalorder %s62, %s63
      %p75 = scmp.eq.s32.totalorder %s18, 1
      %p76 = por %p74, %p75
      %p78 = scmp.ne.s32.totalorder %s63, %s77
      %p79 = scmp.eq.s32.totalorder %s18, 0
      %p80 = por %p78, %p79
      %s82 = sadd.s32 %s81, 1
      %p85 = scmp.eq.s32.totalorder %s12, 1
      %p86 = scmp.ne.s32.totalorder %s81, %s83
      %p87 = scmp.eq.s32.totalorder %s12, 0
      %p88 = por %p86, %p87
      %p89 = scmp.ne.s32.totalorder %s81, %s83
      %p90 = scmp.eq.s32.totalorder %s17, 1
      %p91 = por %p89, %p90
      %p92 = scmp.ne.s32.totalorder %s83, %s84
      %p93 = scmp.eq.s32.totalorder %s17, 0
      %p94 = por %p92, %p93
      %p95 = scmp.ne.s32.totalorder %s83, %s84
      %p96 = scmp.eq.s32.totalorder %s18, 1
      %p97 = por %p95, %p96
      %p99 = scmp.ne.s32.totalorder %s84, %s98
      %p100 = scmp.eq.s32.totalorder %s18, 0
      %p101 = por %p99, %p100
      %s102 = ssub.s32 %s19, %s31
      %s103 = ssub.s32 %s20, %s27
      %s104 = sor.u32 %s102, %s103
      %p105 = scmp.eq.s32.totalorder %s104, 0
      %s107 = sadd.s32 %s106, 1
      %s108 = scalar_select %p105, %s106, %s107
      %p111 = pneg %p105
      %p112 = scmp.eq.s32.totalorder %s12, 1
      %p113 = por %p111, %p112
      %p114 = scmp.ne.s32.totalorder %s106, %s109
      %p115 = scmp.eq.s32.totalorder %s12, 0
      %p116 = por %p114, %p115
      %p117 = scmp.ne.s32.totalorder %s106, %s109
      %p118 = scmp.eq.s32.totalorder %s17, 1
      %p119 = por %p117, %p118
      %p120 = scmp.ne.s32.totalorder %s109, %s110
      %p121 = scmp.eq.s32.totalorder %s17, 0
      %p122 = por %p120, %p121
      %p123 = scmp.ne.s32.totalorder %s109, %s110
      %p124 = scmp.eq.s32.totalorder %s18, 1
      %p125 = por %p123, %p124
      %p127 = scmp.ne.s32.totalorder %s110, %s126
      %p128 = scmp.eq.s32.totalorder %s18, 0
      %p129 = por %p127, %p128
      %p130 = scmp.le.s32.totalorder 1, %s12
      %p131 = scmp.lt.s32.totalorder %s12, 3
      %p132 = pnand %p130, %p131
      %p133 = pneg %p132
      // Predicated region
      $region9: #{tpu_custom_call.1} parent=5 // pred_check
        _
      $region10: #{tpu_custom_call.1} parent=5 // pred_check_branch
        %135 = sbr.rel (%p132) target = $region12
      $region11: #{tpu_custom_call.1} parent=5 // pred_region
        %s136 = ssub.s32 %s12, 1
        // Predicated region
        $region13: #{tpu_custom_call.1} parent=11 // pred_check
          %p137 = pneg %p73
        $region14: #{tpu_custom_call.1} parent=11 // pred_check_branch
          %139 = sbr.rel (%p137) target = $region16
        $region15: #{tpu_custom_call.1} parent=11 // pred_region
          _
        $region16: #{tpu_custom_call.1} parent=11 // pred_fallthru
          _
        // Predicated region
        $region17: #{tpu_custom_call.1} parent=11 // pred_check
          %p140 = pneg %p94
        $region18: #{tpu_custom_call.1} parent=11 // pred_check_branch
          %142 = sbr.rel (%p140) target = $region20
        $region19: #{tpu_custom_call.1} parent=11 // pred_region
          _
        $region20: #{tpu_custom_call.1} parent=11 // pred_fallthru
          _
      $region12: #{tpu_custom_call.1} parent=5 // pred_fallthru
        _
      %p143 = scmp.lt.s32.totalorder %s12, 2
      // Predicated region
      $region21: #{tpu_custom_call.1} parent=5 // pred_check
        %p144 = pneg %p143
      $region22: #{tpu_custom_call.1} parent=5 // pred_check_branch
        %146 = sbr.rel (%p144) target = $region24
      $region23: #{tpu_custom_call.1} parent=5 // pred_region
        // Predicated region
        $region25: #{tpu_custom_call.1} parent=23 // pred_check
          %p147 = pneg %p46
        $region26: #{tpu_custom_call.1} parent=23 // pred_check_branch
          %149 = sbr.rel (%p147) target = $region28
        $region27: #{tpu_custom_call.1} parent=23 // pred_region
          %s150 = smul.u32 2, %s20
          %p151 = scmp.lt.s32.totalorder %s19, 1
          %s152 = scalar_select %p151, %s19, 1
          %p153 = scmp.lt.s32.totalorder %s150, 1
          %s154 = scalar_select %p153, %s150, 1
          %s155 = smul.addr %s152, 10
          %s156 = sadd.s32 %s154, %s155
          %s157 = smul.addr %s156, 4
          %s158 = scalar_lea.vmem %s0, %s157
          %s159 = smul.u32 2, %s20
        $region28: #{tpu_custom_call.1} parent=23 // pred_fallthru
          _
      $region24: #{tpu_custom_call.1} parent=5 // pred_fallthru
        _
      %p160 = scmp.le.s32.totalorder 1, %s12
      %p161 = scmp.lt.s32.totalorder %s12, 3
      %p162 = pnand %p160, %p161
      %p163 = pneg %p162
      // Predicated region
      $region29: #{tpu_custom_call.1} parent=5 // pred_check
        _
      $region30: #{tpu_custom_call.1} parent=5 // pred_check_branch
        %165 = sbr.rel (%p162) target = $region32
      $region31: #{tpu_custom_call.1} parent=5 // pred_region
        %s166 = ssub.s32 %s12, 1
        %s167 = smul.u32 2, %s22
        %p168 = scmp.lt.s32.totalorder %s21, 1
        %s169 = scalar_select %p168, %s21, 1
        %p170 = scmp.lt.s32.totalorder %s167, 1
        %s171 = scalar_select %p170, %s167, 1
        %s172 = smul.addr %s169, 10
        %s173 = sadd.s32 %s171, %s172
        %s174 = smul.addr %s173, 4
        %s175 = scalar_lea.vmem %s0, %s174
        %p176 = pneg %p52
        %p177 = pneg %p49
        %p178 = pneg %p73
        %p179 = pneg %p70
        %p180 = pneg %p94
        %p181 = pneg %p91
        %p182 = pneg %p122
        %p183 = pneg %p119
        %s184 = sand.u32 %s109, 1
        %s185 = scalar_lea.sflag [#allocation3], %s184
        %s186 = sand.u32 %s109, 1
        %s187 = smul.addr %s186, 32
        %s188 = scalar_lea.vmem [#allocation2], %s187
        %s189 = smul.u32 2, %s22
        %p190 = scmp.lt.s32.totalorder %s21, 1
        %s191 = scalar_select %p190, %s21, 1
        %p192 = scmp.lt.s32.totalorder %s189, 1
        %s193 = scalar_select %p192, %s189, 1
        %s194 = smul.addr %s191, 10
        %s195 = sadd.s32 %s193, %s194
        %s196 = smul.addr %s195, 4
        %s197 = scalar_lea.vmem %s0, %s196
        %s198 = smul.u32 2, %s22
        %s199 = smul.u32 2, %s22
        %v201 = vld [vmem:[%s1] sm:$0xf]
        %v202 = vld [vmem:[%s1 + $0x4] sm:$0xf]
        %v203 = vld [vmem:[%s197] sm:$0xff]
        %v204 = vld [vmem:[%s197 + $0x8] sm:$0xff]
        %v205 = vld [vmem:[%s197 + $0x10] sm:$0xff]
        %v206 = vld [vmem:[%s197 + $0x18] sm:$0xff]
        %v207 = vld [vmem:[%s197 + $0x20] sm:$0x33]
        %v208 = vld [vmem:[%s2] sm:$0xff]
        %v209 = vld [vmem:[%s2 + $0x8] sm:$0xff]
        %211 = vset.pattern.permute.xlu0 0
        %212 = vperm.xlu0 %211, %v208
        %v213 = vpop.permute.xlu0 %212
        %216 = vset.pattern.permute.xlu0 0
        %217 = vperm.xlu0 %216, %v209
        %v218 = vpop.permute.xlu0 %217
        %v222 = vunpack.c.l.b16 %v201
        %v223 = vunpack.c.l.b16 %v202
        %v224 = vpack.c.b16 %v223, %v222
        %v230 = vunpack.c.l.b16 %v203
        %v231 = vunpack.c.h.b16 %v203
        %v232 = vunpack.c.l.b16 %v204
        %v233 = vunpack.c.h.b16 %v204
        %v234 = vunpack.c.l.b16 %v205
        %v235 = vunpack.c.h.b16 %v205
        %v236 = vunpack.c.l.b16 %v206
        %v237 = vunpack.c.h.b16 %v206
        %v238 = vunpack.c.l.b16 %v207
        %v239 = vunpack.c.h.b16 %v207
        %v240 = vpack.c.b16 %v232, %v230
        %v241 = vpack.c.b16 %v233, %v231
        %v242 = vpack.c.b16 %v236, %v234
        %v243 = vpack.c.b16 %v237, %v235
        %v244 = vpack.c.b16 %v238, %v238
        %v245 = vpack.c.b16 %v239, %v239
        %vm250 = vcmask 293888
        %v252 = vsel %vm250, %v224, 0
        %vm254 = vcmask 1041408
        %v256 = vsel %vm254, %v244, 0
        %v259 = vsel %vm254, %v245, 0
        %261 = vmatprep.subr.bf16.mxu0 %v241
        %262 = vmatpush1.bf16.msra.mxu0 %v240
        %263 = vmatprep.subr.bf16.mxu0 %v243
        %264 = vmatpush1.bf16.msra.mxu0 %v242
        %265 = vmatprep.subr.bf16.mxu0 %v259
        %266 = vmatpush1.bf16.msra.mxu0 %v256
        %267 = vmatprep.subr.bf16.mxu0 0
        %268 = vmatpush1.bf16.msra.mxu0 0
        %269 = vmatprep.subr.bf16.mxu0 0
        %270 = vmatpush1.bf16.msra.mxu0 0
        %271 = vmatprep.subr.bf16.mxu0 0
        %272 = vmatpush1.bf16.msra.mxu0 0
        %273 = vmatprep.subr.bf16.mxu0 0
        %274 = vmatpush1.bf16.msra.mxu0 0
        %275 = vmatprep.subr.bf16.mxu0 0
        %276 = vmatpush1.bf16.msra.mxu0 0
        %277 = vmatprep.subr.bf16.mxu0 0
        %278 = vmatpush1.bf16.msra.mxu0 0
        %279 = vmatprep.subr.bf16.mxu0 0
        %280 = vmatpush1.bf16.msra.mxu0 0
        %281 = vmatprep.subr.bf16.mxu0 0
        %282 = vmatpush1.bf16.msra.mxu0 0
        %283 = vmatprep.subr.bf16.mxu0 0
        %284 = vmatpush1.bf16.msra.mxu0 0
        %285 = vmatprep.subr.bf16.mxu0 0
        %286 = vmatpush1.bf16.msra.mxu0 0
        %287 = vmatprep.subr.bf16.mxu0 0
        %288 = vmatpush1.bf16.msra.mxu0 0
        %289 = vmatprep.subr.bf16.mxu0 0
        %290 = vmatpush1.bf16.msra.mxu0 0
        %291 = vmatprep.subr.bf16.mxu0 0
        %292 = vmatpush1.bf16.msra.mxu0 0
        %293 = vmatprep.mubr.bf16.mxu0 0
        %294 = vmatmul.mubr.bf16.gmra.mrb[0].mxu0 %v252
        %v295 = vpop.f32.mrb[0].mxu0
        %v296 = vadd.f32 %v213, %v295
        %v297 = vpop.f32.mrb[0].mxu0
        %v298 = vadd.f32 %v213, %v297
        %v299 = vpop.f32.mrb[0].mxu0
        %v300 = vadd.f32 %v218, %v299
        %v301 = vpop.f32.mrb[0].mxu0
        %v302 = vadd.f32 %v218, %v301
        %303 = vdwg.mxu0
        %v304 = vmax.f32 %v296, 0.0
        %v305 = vmax.f32 %v298, 0.0
        %v306 = vmax.f32 %v300, 0.0
        %v307 = vmax.f32 %v302, 0.0
        %308 = vst [vmem:[%s188] sm:$0xff] %v304
        %309 = vst [vmem:[%s188 + $0x8] sm:$0xff] %v305
        %310 = vst [vmem:[%s188 + $0x10] sm:$0xff] %v306
        %311 = vst [vmem:[%s188 + $0x18] sm:$0xff] %v307
        %s312 = sand.u32 %s109, 1
        %s313 = scalar_lea.sflag [#allocation3], %s312
        %s314 = sand.u32 %s109, 1
        %s315 = smul.addr %s314, 32
        %s316 = scalar_lea.vmem [#allocation2], %s315
        // Predicated region
        $region33: #{tpu_custom_call.1} parent=31 // pred_check
          %p317 = pneg %p119
        $region34: #{tpu_custom_call.1} parent=31 // pred_check_branch
          %319 = sbr.rel (%p317) target = $region36
        $region35: #{tpu_custom_call.1} parent=31 // pred_region
          %s320 = smul.u32 2, %s22
          %s322 = ssub.s32 512, 512
          %323 = vsyncadd %s313, %s322
          %s324 = smul.addr %s21, 4
          %s325 = sadd.s32 %s320, %s324
          %s326 = smul.addr %s325, 128
          %s327 = scalar_lea.hbm %s3, %s326
          %s328 = sshll.u32 %s316, 4
          %s329 = int_to_ptr.vmem [resolvable:$true] %s328
          %334 = dma.vmem_to_hbm [thread:$0]  %s329, 512, %s327, %s313, 256, 256, 16
        $region36: #{tpu_custom_call.1} parent=31 // pred_fallthru
          _
      $region32: #{tpu_custom_call.1} parent=5 // pred_fallthru
        _
      %p335 = scmp.le.s32.totalorder 2, %s12
      // Predicated region
      $region37: #{tpu_custom_call.1} parent=5 // pred_check
        %p336 = pneg %p335
      $region38: #{tpu_custom_call.1} parent=5 // pred_check_branch
        %338 = sbr.rel (%p336) target = $region40
      $region39: #{tpu_custom_call.1} parent=5 // pred_region
        %s339 = ssub.s32 %s12, 2
        // Predicated region
        $region41: #{tpu_custom_call.1} parent=39 // pred_check
          %p340 = pneg %p125
        $region42: #{tpu_custom_call.1} parent=39 // pred_check_branch
          %342 = sbr.rel (%p340) target = $region44
        $region43: #{tpu_custom_call.1} parent=39 // pred_region
          %s343 = sand.u32 %s110, 1
          %s344 = scalar_lea.sflag [#allocation3], %s343
          %s345 = sand.u32 %s110, 1
          %s346 = smul.addr %s345, 32
          %s347 = scalar_lea.vmem [#allocation2], %s346
          %348 = dma.done %s344, 512
        $region44: #{tpu_custom_call.1} parent=39 // pred_fallthru
          _
      $region40: #{tpu_custom_call.1} parent=5 // pred_fallthru
        _
    $region6: #{tpu_custom_call.1} parent=1 // loop_footer
      %s16 = sadd.s32 1, %s12
    $region7: #{tpu_custom_call.1} parent=1 // loop_footer_branch
      %11 = sbr.rel target = $region3
    $region8: #{tpu_custom_call.1} parent=1 // loop_exit
      _
    %349 = vsyncpa [#allocation3], 1
    %s350 = scalar_lea.sflag [#allocation3], 1
    %351 = vsyncpa %s350, 1

</llo_original>
